<compile_context>
chip_gen: v7x
topology: tpu7x:2x2x1
jax: 0.10.0
libtpu: 0.0.40
codegen_flags: <defaults>
</compile_context>

<pallas_src>
import functools

import jax
import jax.numpy as jnp
import numpy as np
from jax.experimental import pallas as pl
from jax.experimental.pallas import tpu as pltpu


def _gem_kernel(p_ref, x_ref, o_ref, *, eps, int_p):
    """clamp -> pow(p) -> windowed mean -> pow(1/p), dense & fully vectorized.

    p_ref : SMEM (1,)             learnable GeM exponent
    x_ref : VMEM (bn, 1, C*W, K)  one batch tile; each sublane row is one window
    o_ref : VMEM (bn, 1, C*W)     lane-dense pooled output
    """
    x = x_ref[...].astype(jnp.float32)           # f32 math on every generation
    xc = jnp.maximum(x, eps)                     # clamp(min=eps)

    if int_p is not None:
        # p frozen to a small integer at trace time: repeated VPU multiplies,
        # the single EUP pipe is kept off the dominant per-element loop.
        xp = xc
        for _ in range(int_p - 1):
            xp = xp * xc
    else:
        p = p_ref[0].astype(jnp.float32)
        xp = jnp.power(xc, p)                    # exp(p*log(x)) on the EUP

    # Windowed mean over the lane (K) axis: VPU adds + one XLU lane reduce per
    # sublane row.  Kept off the MXU (a K-reduction as a width-1 matmul wastes
    # >99% of the MXU columns).
    pooled = jnp.mean(xp, axis=-1)               # (bn, 1, C*W), f32 accumulation

    p = p_ref[0].astype(jnp.float32)
    o_ref[...] = jnp.power(pooled, 1.0 / p).astype(o_ref.dtype)   # one lane-dense store


def gem_pool_1d(x, p, eps=1e-6):
    """GeMPool1D forward. x: (N, C, L), p: (1,). Returns the squeezed pooled output."""
    N, C, L = x.shape
    K = C                              # kernel_size = x.size(1)
    assert L >= K, "avg_pool1d requires L >= kernel_size"
    W = (L - K) // K + 1               # stride = kernel_size, no padding

    # Dense, window-major layout: (N, C, L) -> (N, 1, C*W, K).
    # Row-major this is a pure metadata reshape when L == W*K (no HBM copy);
    # only an L % C tail forces one contiguous-slice copy.
    if L == W * K:
        xw = x.reshape(N, 1, C * W, K)
    else:
        # TODO(synk): for L % C != 0, a grid axis over W (index_map -> window
        # offset on the original (N, C, L)) would avoid this slice copy.
        xw = x[:, :, : W * K].reshape(N, 1, C * W, K)

    # Freeze p to a small integer when it is concrete at trace time (the common
    # p=3 init) so the kernel uses VPU multiplies instead of EUP log/exp.
    int_p = None
    try:
        pv = float(jnp.asarray(p).reshape(-1)[0])     # raises if p is a tracer
        if pv == round(pv) and 1 <= int(round(pv)) <= 8:
            int_p = int(round(pv))
    except Exception:
        int_p = None                                  # traced p -> general pow path

    # --- Per-generation VMEM budget & batch-tile size -----------------------
    try:
        vmem_cap = int(pltpu.get_tpu_info().vmem_capacity_bytes)
    except Exception:
        vmem_cap = 64 * 1024 * 1024                   # v7x per-TC physical (most restrictive)
    vmem_limit = min((vmem_cap * 3) // 4, 96 * 1024 * 1024)  # ~48 MiB v7x, 96 MiB v5e/v6e
    budget = vmem_limit // 2                          # working-set target, generous headroom

    itemsize = jnp.dtype(x.dtype).itemsize
    cw = C * W
    pad_sub = ((cw + 7) // 8) * 8                     # sublane padding of the C*W dim
    pad_lane = ((K + 127) // 128) * 128               # lane padding of the K dim
    in_row = pad_sub * pad_lane * itemsize            # one batch row of the input tile
    tmp_row = 2 * cw * K * 4                          # f32 upcast + xp intermediates
    out_row = 8 * ((cw + 127) // 128) * 128 * itemsize
    per_row = 2 * in_row + 2 * out_row + tmp_row      # 2x = double-buffered in/out

    bn = int(max(1, min(N, budget // max(per_row, 1))))
    # Guarantee >= 2 (ideally >= 4) grid steps so v7x shards the "parallel"
    # batch axis across both TensorCores (cheap no-op on single-TC v5e/v6e).
    if N >= 4:
        bn = min(bn, -(-N // 4))
    elif N >= 2:
        bn = min(bn, -(-N // 2))
    grid = (pl.cdiv(N, bn),)

    out = pl.pallas_call(
        functools.partial(_gem_kernel, eps=eps, int_p=int_p),
        out_shape=jax.ShapeDtypeStruct((N, 1, cw), x.dtype),
        grid=grid,
        in_specs=[
            pl.BlockSpec(memory_space=pltpu.MemorySpace.SMEM),       # p: scalar in SMEM
            pl.BlockSpec((bn, 1, cw, K), lambda i: (i, 0, 0, 0)),    # pipelined x tile
        ],
        out_specs=pl.BlockSpec((bn, 1, cw), lambda i: (i, 0, 0)),    # lane-dense output
        compiler_params=pltpu.CompilerParams(
            dimension_semantics=("parallel",),
            vmem_limit_bytes=int(vmem_limit),
        ),
    )(p, xw)

    # (N, 1, C*W) -> (N, C, W); .squeeze() in PyTorch removes ALL size-1 dims.
    return jnp.squeeze(out.reshape(N, C, W))


def _reference(x, p, eps=1e-6):
    """Pure-JAX reference mirroring the PyTorch code (f32 internally)."""
    N, C, L = x.shape
    K = C
    W = (L - K) // K + 1
    xf = x.astype(jnp.float32)
    pf = jnp.asarray(p).reshape(-1)[0].astype(jnp.float32)
    xp = jnp.power(jnp.maximum(xf, eps), pf)
    windows = xp[:, :, : W * K].reshape(N, C, W, K)
    pooled = jnp.mean(windows, axis=-1)
    return jnp.squeeze(jnp.power(pooled, 1.0 / pf).astype(x.dtype))


if __name__ == "__main__":
    key = jax.random.PRNGKey(0)

    # Small shapes consistent with the module: (batch=2, channels=16, length=48)
    # -> kernel_size = stride = 16, W = 3 windows, output (2, 16, 3) after squeeze.
    N, C, L = 2, 16, 48
    x = jax.random.normal(key, (N, C, L), dtype=jnp.float32)
    eps = 1e-6

    # 1) Default init p = ones(1) * 3 -> integer-p specialized (VPU-multiply) path.
    p3 = jnp.ones((1,), dtype=jnp.float32) * 3.0
    out3 = jax.block_until_ready(gem_pool_1d(x, p3, eps))
    np.testing.assert_allclose(np.asarray(out3), np.asarray(_reference(x, p3, eps)),
                               rtol=1e-4, atol=1e-4)

    # 2) Non-integer p -> general EUP (log/exp) path, as used once p is trained.
    p25 = jnp.ones((1,), dtype=jnp.float32) * 2.5
    out25 = jax.block_until_ready(gem_pool_1d(x, p25, eps))
    np.testing.assert_allclose(np.asarray(out25), np.asarray(_reference(x, p25, eps)),
                               rtol=1e-4, atol=1e-4)

    print("KERNEL_OK")
</pallas_src>

<mosaic_0001>
module attributes {stable_mosaic.version = 11 : i64} {
  func.func @_gem_kernel(%arg0: i32, %arg1: memref<1xf32, #tpu.memory_space<smem>>, %arg2: memref<1x1x48x16xf32, #tpu.memory_space<vmem>>, %arg3: memref<1x1x48xf32, #tpu.memory_space<vmem>>) attributes {dimension_semantics = [#tpu.dimension_semantics<parallel>], iteration_bounds = array<i64: 2>, scalar_prefetch = 0 : i64, scratch_operands = 0 : i64, tpu.core_type = #tpu.core_type<tc>, window_params = [{transform_indices = @transform_0, window_bounds = array<i64: 1>}, {transform_indices = @transform_1, window_bounds = array<i64: 1, 1, 48, 16>}, {transform_indices = @transform_2, window_bounds = array<i64: 1, 1, 48>}]} {
    %c0 = arith.constant 0 : index
    %c0_0 = arith.constant 0 : index
    %c0_1 = arith.constant 0 : index
    %c0_2 = arith.constant 0 : index
    %0 = vector.load %arg2[%c0, %c0_0, %c0_1, %c0_2] : memref<1x1x48x16xf32, #tpu.memory_space<vmem>>, vector<1x1x48x16xf32>
    %cst = arith.constant 9.99999997E-7 : f32
    %1 = vector.broadcast %cst : f32 to vector<1x1x48x16xf32>
    %2 = arith.maximumf %0, %1 : vector<1x1x48x16xf32>
    %3 = arith.mulf %2, %2 : vector<1x1x48x16xf32>
    %4 = arith.mulf %3, %2 : vector<1x1x48x16xf32>
    %cst_3 = arith.constant dense<0.000000e+00> : vector<1x1x48xf32>
    %5 = vector.multi_reduction <add>, %4, %cst_3 [3] : vector<1x1x48x16xf32> to vector<1x1x48xf32>
    %cst_4 = arith.constant 1.600000e+01 : f32
    %6 = vector.broadcast %cst_4 : f32 to vector<1x1x48xf32>
    %7 = arith.divf %5, %6 : vector<1x1x48xf32>
    %c0_5 = arith.constant 0 : index
    %8 = memref.load %arg1[%c0_5] : memref<1xf32, #tpu.memory_space<smem>>
    %cst_6 = arith.constant 1.000000e+00 : f32
    %9 = arith.divf %cst_6, %8 : f32
    %10 = vector.broadcast %9 : f32 to vector<1x1x48xf32>
    %11 = math.powf %7, %10 : vector<1x1x48xf32>
    %c0_7 = arith.constant 0 : index
    %c0_8 = arith.constant 0 : index
    %c0_9 = arith.constant 0 : index
    %12 = vector.load %arg3[%c0_7, %c0_8, %c0_9] : memref<1x1x48xf32, #tpu.memory_space<vmem>>, vector<1x1x48xf32>
    tpu.vector_store %arg3[%c0_7, %c0_8, %c0_9], %11 {strides = array<i32>} : memref<1x1x48xf32, #tpu.memory_space<vmem>>, vector<1x1x48xf32>,
    return
  }
  func.func @transform_0(%arg0: i32) -> i32 {
    %c0_i32 = arith.constant 0 : i32
    %c0_i32_0 = arith.constant 0 : i32
    return %c0_i32 : i32
  }
  func.func @transform_1(%arg0: i32) -> (i32, i32, i32, i32) {
    %c0_i32 = arith.constant 0 : i32
    %c0_i32_0 = arith.constant 0 : i32
    %c0_i32_1 = arith.constant 0 : i32
    %c0_i32_2 = arith.constant 0 : i32
    return %arg0, %c0_i32, %c0_i32_0, %c0_i32_1 : i32, i32, i32, i32
  }
  func.func @transform_2(%arg0: i32) -> (i32, i32, i32) {
    %c0_i32 = arith.constant 0 : i32
    %c0_i32_0 = arith.constant 0 : i32
    %c0_i32_1 = arith.constant 0 : i32
    return %arg0, %c0_i32, %c0_i32_0 : i32, i32, i32
  }
}

</mosaic_0001>

<llo_original>
// kernel: tpu_custom_call.1
$region0: #{tpu_custom_call.1}
  #allocation0 [shape = 'u32[]', space=smem, size = 0x4, offset = 0x4, fixed_abs, tag = 'smem constant byte address 0x4 - core index']
  #allocation1 [shape = 'u32[144,128]{1,0:T(1,128)}', space=vmem, size = 0x12000, scoped, tag = 'internal scratch']
  #allocation2 [shape = 'f32[1]{0:T(128)S(6)}', space=smem, size = 0x200, scoped, tag = 'scoped memory for tpu_custom_call.1']
  %s0 = inlined_call_operand.<no memory space> [shape: f32[1], index: 0, kind: input, shape index: {}]
  %s1 = inlined_call_operand.vmem [shape: f32[2,1,48,16], index: 1, kind: input, shape index: {}]
  %s2 = inlined_call_operand.hbm [shape: f32[2,1,48], index: 2, kind: output, shape index: {}]
  %s3 = sld [smem:[#allocation0]]
  $region41: #{tpu_custom_call.1} parent=0
    _
  %s5 = ssub.s32 1, %s3
  %s6 = scalar_select 0, %s5, %s3
  %7 = sst [smem:[#allocation2]] %s0
  $region1: #{tpu_custom_call.1} parent=0
    #allocation3 [shape = 'u8[1024]{0}', space=vmem, size = 0x400, scoped, tag = 'output window, operand 0']
    #allocation4 [shape = 's32[2]{0}', space=sflag, size = 0x8, scoped, tag = 'scoped memory for tpu_custom_call.1']
    %8 = vsyncpa [#allocation4], 0
    %s9 = scalar_lea.sflag [#allocation4], 1
    %10 = vsyncpa %s9, 0
    loop: start=0, step=1, limit=4
    $region2: #{tpu_custom_call.1} parent=1 // loop_pre_header
      _
    $region3: #{tpu_custom_call.1} parent=1 // loop_header
      %s12 = sphi 0, %s16
      %p13 = scmp.ge.s32.totalorder %s12, 4
      %s20 = sphi 0, %s20
      %s22 = sphi 0, %s20
      %s23 = sphi 0, %s22
      %s37 = sphi 0, %s23
      %s43 = sphi 0, %s45
      %s46 = sphi 0, %s43
      %s47 = sphi 0, %s46
      %s63 = sphi 0, %s47
      %s69 = sphi 0, %s71
      %s72 = sphi 0, %s69
      %s73 = sphi 0, %s72
      %s89 = sphi 0, %s73
    $region4: #{tpu_custom_call.1} parent=1 // loop_header_branch
      %15 = sbr.rel (%p13) target = $region8
    $region5: #{tpu_custom_call.1} parent=1 // loop_body
      %s17 = ssub.s32 %s12, 1
      %s18 = ssub.s32 %s12, 2
      %s19 = sadd.s32 %s12, 1
      %s21 = sadd.s32 %s20, 1
      %p24 = scmp.eq.s32.totalorder %s12, 1
      %p25 = scmp.ne.s32.totalorder %s20, %s22
      %p26 = scmp.eq.s32.totalorder %s12, 0
      %p27 = por %p25, %p26
      %p28 = scmp.ne.s32.totalorder %s20, %s22
      %p29 = scmp.eq.s32.totalorder %s17, 1
      %p30 = por %p28, %p29
      %p31 = scmp.ne.s32.totalorder %s22, %s23
      %p32 = scmp.eq.s32.totalorder %s17, 0
      %p33 = por %p31, %p32
      %p34 = scmp.ne.s32.totalorder %s22, %s23
      %p35 = scmp.eq.s32.totalorder %s18, 1
      %p36 = por %p34, %p35
      %p38 = scmp.ne.s32.totalorder %s23, %s37
      %p39 = scmp.eq.s32.totalorder %s18, 0
      %p40 = por %p38, %p39
      %s41 = ssub.s32 %s12, %s19
      %p42 = scmp.eq.s32.totalorder %s41, 0
      %s44 = sadd.s32 %s43, 1
      %s45 = scalar_select %p42, %s43, %s44
      %p48 = pneg %p42
      %p49 = scmp.eq.s32.totalorder %s12, 1
      %p50 = por %p48, %p49
      %p51 = scmp.ne.s32.totalorder %s43, %s46
      %p52 = scmp.eq.s32.totalorder %s12, 0
      %p53 = por %p51, %p52
      %p54 = scmp.ne.s32.totalorder %s43, %s46
      %p55 = scmp.eq.s32.totalorder %s17, 1
      %p56 = por %p54, %p55
      %p57 = scmp.ne.s32.totalorder %s46, %s47
      %p58 = scmp.eq.s32.totalorder %s17, 0
      %p59 = por %p57, %p58
      %p60 = scmp.ne.s32.totalorder %s46, %s47
      %p61 = scmp.eq.s32.totalorder %s18, 1
      %p62 = por %p60, %p61
      %p64 = scmp.ne.s32.totalorder %s47, %s63
      %p65 = scmp.eq.s32.totalorder %s18, 0
      %p66 = por %p64, %p65
      %s67 = ssub.s32 %s12, %s19
      %p68 = scmp.eq.s32.totalorder %s67, 0
      %s70 = sadd.s32 %s69, 1
      %s71 = scalar_select %p68, %s69, %s70
      %p74 = pneg %p68
      %p75 = scmp.eq.s32.totalorder %s12, 1
      %p76 = por %p74, %p75
      %p77 = scmp.ne.s32.totalorder %s69, %s72
      %p78 = scmp.eq.s32.totalorder %s12, 0
      %p79 = por %p77, %p78
      %p80 = scmp.ne.s32.totalorder %s69, %s72
      %p81 = scmp.eq.s32.totalorder %s17, 1
      %p82 = por %p80, %p81
      %p83 = scmp.ne.s32.totalorder %s72, %s73
      %p84 = scmp.eq.s32.totalorder %s17, 0
      %p85 = por %p83, %p84
      %p86 = scmp.ne.s32.totalorder %s72, %s73
      %p87 = scmp.eq.s32.totalorder %s18, 1
      %p88 = por %p86, %p87
      %p90 = scmp.ne.s32.totalorder %s73, %s89
      %p91 = scmp.eq.s32.totalorder %s18, 0
      %p92 = por %p90, %p91
      %p93 = scmp.le.s32.totalorder 1, %s12
      %p94 = scmp.lt.s32.totalorder %s12, 3
      %p95 = pnand %p93, %p94
      %p96 = pneg %p95
      // Predicated region
      $region9: #{tpu_custom_call.1} parent=5 // pred_check
        _
      $region10: #{tpu_custom_call.1} parent=5 // pred_check_branch
        %98 = sbr.rel (%p95) target = $region12
      $region11: #{tpu_custom_call.1} parent=5 // pred_region
        %s99 = ssub.s32 %s12, 1
        // Predicated region
        $region13: #{tpu_custom_call.1} parent=11 // pred_check
          %p100 = pneg %p33
        $region14: #{tpu_custom_call.1} parent=11 // pred_check_branch
          %102 = sbr.rel (%p100) target = $region16
        $region15: #{tpu_custom_call.1} parent=11 // pred_region
          _
        $region16: #{tpu_custom_call.1} parent=11 // pred_fallthru
          _
      $region12: #{tpu_custom_call.1} parent=5 // pred_fallthru
        _
      %p103 = scmp.lt.s32.totalorder %s12, 2
      // Predicated region
      $region17: #{tpu_custom_call.1} parent=5 // pred_check
        %p104 = pneg %p103
      $region18: #{tpu_custom_call.1} parent=5 // pred_check_branch
        %106 = sbr.rel (%p104) target = $region20
      $region19: #{tpu_custom_call.1} parent=5 // pred_region
        // Predicated region
        $region21: #{tpu_custom_call.1} parent=19 // pred_check
          %p107 = pneg %p53
        $region22: #{tpu_custom_call.1} parent=19 // pred_check_branch
          %109 = sbr.rel (%p107) target = $region24
        $region23: #{tpu_custom_call.1} parent=19 // pred_region
          %p110 = scmp.lt.s32.totalorder %s12, 1
          %s111 = scalar_select %p110, %s12, 1
          %s112 = smul.addr %s111, 6
          %s113 = smul.addr %s112, 8
          %s114 = scalar_lea.vmem %s1, %s113
        $region24: #{tpu_custom_call.1} parent=19 // pred_fallthru
          _
      $region20: #{tpu_custom_call.1} parent=5 // pred_fallthru
        _
      %p115 = scmp.le.s32.totalorder 1, %s12
      %p116 = scmp.lt.s32.totalorder %s12, 3
      %p117 = pnand %p115, %p116
      %p118 = pneg %p117
      // Predicated region
      $region25: #{tpu_custom_call.1} parent=5 // pred_check
        _
      $region26: #{tpu_custom_call.1} parent=5 // pred_check_branch
        %120 = sbr.rel (%p117) target = $region28
      $region27: #{tpu_custom_call.1} parent=5 // pred_region
        %s121 = ssub.s32 %s12, 1
        %p122 = pneg %p33
        %p123 = pneg %p30
        %p124 = scmp.lt.s32.totalorder %s17, 1
        %s125 = scalar_select %p124, %s17, 1
        %s126 = smul.addr %s125, 6
        %s127 = smul.addr %s126, 8
        %s128 = scalar_lea.vmem %s1, %s127
        %p129 = pneg %p59
        %p130 = pneg %p56
        %p131 = pneg %p85
        %p132 = pneg %p82
        %s133 = sand.u32 %s72, 1
        %s134 = scalar_lea.sflag [#allocation4], %s133
        %s135 = sand.u32 %s72, 1
        %s136 = scalar_lea.vmem [#allocation3], %s135
        %p137 = scmp.lt.s32.totalorder %s17, 1
        %s138 = scalar_select %p137, %s17, 1
        %s139 = smul.addr %s138, 6
        %s140 = smul.addr %s139, 8
        %s141 = scalar_lea.vmem %s1, %s140
        %v142 = vld [vmem:[%s141] sm:$0xff]
        %v143 = vld [vmem:[%s141 + $0x8] sm:$0xff]
        %v144 = vld [vmem:[%s141 + $0x10] sm:$0xff]
        %v145 = vld [vmem:[%s141 + $0x18] sm:$0xff]
        %v146 = vld [vmem:[%s141 + $0x20] sm:$0xff]
        %v147 = vld [vmem:[%s141 + $0x28] sm:$0xff]
        %v148 = vmax.f32 %v142, 1e-06
        %v149 = vmax.f32 %v143, 1e-06
        %v150 = vmax.f32 %v144, 1e-06
        %v151 = vmax.f32 %v145, 1e-06
        %v152 = vmax.f32 %v146, 1e-06
        %v153 = vmax.f32 %v147, 1e-06
        %v154 = vmul.f32 %v148, %v148
        %v155 = vmul.f32 %v149, %v149
        %v156 = vmul.f32 %v150, %v150
        %v157 = vmul.f32 %v151, %v151
        %v158 = vmul.f32 %v152, %v152
        %v159 = vmul.f32 %v153, %v153
        %v160 = vmul.f32 %v154, %v148
        %v161 = vmul.f32 %v155, %v149
        %v162 = vmul.f32 %v156, %v150
        %v163 = vmul.f32 %v157, %v151
        %v164 = vmul.f32 %v158, %v152
        %v165 = vmul.f32 %v159, %v153
        %vm166 = vcmask 130048
        %v167 = vsel %vm166, %v160, 0.0
        %168 = vadd.xlane.f32.xlu0 %v167
        %v169 = vpop.xlane.xlu0 %168
        %v170 = vsel %vm166, %v161, 0.0
        %171 = vadd.xlane.f32.xlu0 %v170
        %v172 = vpop.xlane.xlu0 %171
        %v173 = vsel %vm166, %v162, 0.0
        %174 = vadd.xlane.f32.xlu0 %v173
        %v175 = vpop.xlane.xlu0 %174
        %v176 = vsel %vm166, %v163, 0.0
        %177 = vadd.xlane.f32.xlu0 %v176
        %v178 = vpop.xlane.xlu0 %177
        %v179 = vsel %vm166, %v164, 0.0
        %180 = vadd.xlane.f32.xlu0 %v179
        %v181 = vpop.xlane.xlu0 %180
        %v182 = vsel %vm166, %v165, 0.0
        %183 = vadd.xlane.f32.xlu0 %v182
        %v184 = vpop.xlane.xlu0 %183
        %v185 = vrcp.pop 16.0
        %v186 = vmul.f32 %v169, %v185
        %v187 = vmul.f32 %v172, %v185
        %v188 = vmul.f32 %v175, %v185
        %v189 = vmul.f32 %v178, %v185
        %v190 = vmul.f32 %v181, %v185
        %v191 = vmul.f32 %v184, %v185
        %s192 = sld [smem:[#allocation2]]
        %v193 = vstv %s192
        %v194 = vrcp.pop %v193
        %s195 = vtos %v194
        %v196 = vstv %s195
        %v197 = vpow.f32 %v186, %v196
        %v198 = vpow.f32 %v187, %v196
        %v199 = vpow.f32 %v188, %v196
        %v200 = vpow.f32 %v189, %v196
        %v201 = vpow.f32 %v190, %v196
        %v202 = vpow.f32 %v191, %v196
        %v209 = vlaneseq
        %v210 = vand.u32 %v209, 127
        %v211 = vlaneseq
        %v212 = vshrl.u32 %v211, 7
        %v213 = vsub.s32 %v210, %v212
        %v214 = vrot.slane %v197, %v213
        %v215 = vadd.s32 %v210, 4294967288
        %v216 = vlaneseq
        %v217 = vshrl.u32 %v216, 7
        %v218 = vsub.s32 %v215, %v217
        %v219 = vrot.slane %v198, %v218
        %vm220 = vcmask 130112
        %v221 = vsel %vm220, %v219, %v214
        %v222 = vadd.s32 %v210, 4294967280
        %v223 = vlaneseq
        %v224 = vshrl.u32 %v223, 7
        %v225 = vsub.s32 %v222, %v224
        %v226 = vrot.slane %v199, %v225
        %vm227 = vcmask 195712
        %v228 = vsel %vm227, %v226, %v221
        %v229 = vadd.s32 %v210, 4294967272
        %v230 = vlaneseq
        %v231 = vshrl.u32 %v230, 7
        %v232 = vsub.s32 %v229, %v231
        %v233 = vrot.slane %v200, %v232
        %vm234 = vcmask 261312
        %v235 = vsel %vm234, %v233, %v228
        %v236 = vadd.s32 %v210, 4294967264
        %v237 = vlaneseq
        %v238 = vshrl.u32 %v237, 7
        %v239 = vsub.s32 %v236, %v238
        %v240 = vrot.slane %v201, %v239
        %vm241 = vcmask 326912
        %v242 = vsel %vm241, %v240, %v235
        %v243 = vadd.s32 %v210, 4294967256
        %v244 = vlaneseq
        %v245 = vshrl.u32 %v244, 7
        %v246 = vsub.s32 %v243, %v245
        %v247 = vrot.slane %v202, %v246
        %vm248 = vcmask 392512
        %v249 = vsel %vm248, %v247, %v242
        %vm251 = vcmask 385024
        %252 = vst.msk [vmem:[%s136] sm:$0x1] %vm251, %v249
        %s253 = sand.u32 %s72, 1
        %s254 = scalar_lea.sflag [#allocation4], %s253
        %s255 = sand.u32 %s72, 1
        %s256 = scalar_lea.vmem [#allocation3], %s255
        // Predicated region
        $region29: #{tpu_custom_call.1} parent=27 // pred_check
          %p257 = pneg %p82
        $region30: #{tpu_custom_call.1} parent=27 // pred_check_branch
          %259 = sbr.rel (%p257) target = $region32
        $region31: #{tpu_custom_call.1} parent=27 // pred_region
          %s261 = ssub.s32 16, 16
          %262 = vsyncadd %s254, %s261
          %s263 = smul.addr %s17, 16
          %s264 = scalar_lea.hbm %s2, %s263
          %s266 = sshll.u32 %s256, 4
          %s267 = int_to_ptr.vmem [resolvable:$true] %s266
          %269 = dma.vmem_to_hbm [thread:$0]  %s267, 16, %s264, %s254
        $region32: #{tpu_custom_call.1} parent=27 // pred_fallthru
          _
      $region28: #{tpu_custom_call.1} parent=5 // pred_fallthru
        _
      %p270 = scmp.le.s32.totalorder 2, %s12
      // Predicated region
      $region33: #{tpu_custom_call.1} parent=5 // pred_check
        %p271 = pneg %p270
      $region34: #{tpu_custom_call.1} parent=5 // pred_check_branch
        %273 = sbr.rel (%p271) target = $region36
      $region35: #{tpu_custom_call.1} parent=5 // pred_region
        %s274 = ssub.s32 %s12, 2
        // Predicated region
        $region37: #{tpu_custom_call.1} parent=35 // pred_check
          %p275 = pneg %p88
        $region38: #{tpu_custom_call.1} parent=35 // pred_check_branch
          %277 = sbr.rel (%p275) target = $region40
        $region39: #{tpu_custom_call.1} parent=35 // pred_region
          %s278 = sand.u32 %s73, 1
          %s279 = scalar_lea.sflag [#allocation4], %s278
          %s280 = sand.u32 %s73, 1
          %s281 = scalar_lea.vmem [#allocation3], %s280
          %282 = dma.done %s279, 16
        $region40: #{tpu_custom_call.1} parent=35 // pred_fallthru
          _
      $region36: #{tpu_custom_call.1} parent=5 // pred_fallthru
        _
    $region6: #{tpu_custom_call.1} parent=1 // loop_footer
      %s16 = sadd.s32 1, %s12
    $region7: #{tpu_custom_call.1} parent=1 // loop_footer_branch
      %11 = sbr.rel target = $region3
    $region8: #{tpu_custom_call.1} parent=1 // loop_exit
      _
    %283 = vsyncpa [#allocation4], 1
    %s284 = scalar_lea.sflag [#allocation4], 1
    %285 = vsyncpa %s284, 1

</llo_original>
